<compile_context>
chip_gen: v7x
topology: tpu7x:2x2x1
jax: 0.10.0
libtpu: 0.0.40
codegen_flags: <defaults>
</compile_context>

<pallas_src>
import jax
import jax.numpy as jnp
from jax.experimental import pallas as pl
from jax.experimental.pallas import tpu as pltpu

IN_DIM = 784
HID = 64
OUT_DIM = 10
OUT_PAD = 128       # lane-dense padded logit width used *inside* the kernel
_NEG = -1e30        # logit value for padded (never-selected) classes


def _mlp_kernel(x_ref, w1_ref, w2_ref, w3_ref, w4_ref, b_ref, out_ref):
    """One batch tile: 4 matmuls (MXU) + ReLU (VPU) + log-softmax (VPU/EUP/XLU).

    x_ref   : (TILE_B, 784)   streamed per grid step (HBM dtype, cast here)
    w*_ref  : VMEM-resident weights (constant index_map); dtype = compute dtype
    b_ref   : (4, 128) packed f32 biases; rows 0..2 -> b1..b3 in [:64],
              row 3 -> b4 padded with -1e30 beyond column 10
    out_ref : (TILE_B, 10)    log-softmax output (masked lane stores)
    """
    cd = w1_ref.dtype                    # MXU input dtype; accumulation is f32
    x = x_ref[...].astype(cd)            # in-kernel cast is free (hidden by DMA)

    b = b_ref[...]
    b1 = b[0:1, :HID]
    b2 = b[1:2, :HID]
    b3 = b[2:3, :HID]
    b4 = b[3:4, :]

    h = jnp.dot(x, w1_ref[...], preferred_element_type=jnp.float32) + b1
    h = jnp.maximum(h, 0.0)
    h = jnp.dot(h.astype(cd), w2_ref[...], preferred_element_type=jnp.float32) + b2
    h = jnp.maximum(h, 0.0)
    h = jnp.dot(h.astype(cd), w3_ref[...], preferred_element_type=jnp.float32) + b3
    h = jnp.maximum(h, 0.0)
    logits = jnp.dot(h.astype(cd), w4_ref[...],
                     preferred_element_type=jnp.float32) + b4   # (TILE_B, 128)

    # log_softmax over the padded lane-dense feature axis.  Pad columns hold
    # -1e30 so they never win the max and contribute exp(...) == 0 to the
    # denominator, hence columns [:10] equal log_softmax over the 10 classes.
    m = jnp.max(logits, axis=-1, keepdims=True)
    shifted = logits - m
    lse = jnp.log(jnp.sum(jnp.exp(shifted), axis=-1, keepdims=True))
    out_ref[...] = (shifted[:, :OUT_DIM] - lse).astype(out_ref.dtype)


def pack_params(params, compute_dtype=jnp.float32):
    """One-time parameter prep (do NOT redo this per forward call).

    Casts weights to the compute dtype, pads fc4's weight to 128 lane-dense
    output columns (zero weights, -1e30 bias on pad columns) and packs the four
    tiny biases into a single (4, 128) f32 array (one DMA).
    """
    cd = jnp.dtype(compute_dtype)
    w1 = params["w1"].astype(cd)
    w2 = params["w2"].astype(cd)
    w3 = params["w3"].astype(cd)
    w4 = jnp.pad(params["w4"], ((0, 0), (0, OUT_PAD - OUT_DIM))).astype(cd)

    bpack = jnp.zeros((4, OUT_PAD), jnp.float32)
    bpack = bpack.at[0, :HID].set(params["b1"].reshape(HID).astype(jnp.float32))
    bpack = bpack.at[1, :HID].set(params["b2"].reshape(HID).astype(jnp.float32))
    bpack = bpack.at[2, :HID].set(params["b3"].reshape(HID).astype(jnp.float32))
    b4row = jnp.full((OUT_PAD,), _NEG, jnp.float32)
    b4row = b4row.at[:OUT_DIM].set(params["b4"].reshape(OUT_DIM).astype(jnp.float32))
    bpack = bpack.at[3, :].set(b4row)
    return {"w1": w1, "w2": w2, "w3": w3, "w4p": w4, "bpack": bpack}


def mlp_forward(x, packed, *, tile_b=4096):
    """x: (B, 784), any float dtype (streamed as-is; cast in-kernel).
    packed: output of pack_params().  Returns (B, 10) f32 log-probabilities.

    tile_b=4096 fits v7x's 64 MiB per-TC VMEM (~33 MiB with double-buffering)
    and is also fine on v5e/v6e (128 MiB).  For bf16 throughput, pack params
    with compute_dtype=jnp.bfloat16 and feed x already in bf16.
    """
    B = x.shape[0]

    # Tile size: <= B, multiple of 8 unless it equals B (the (8,128) rule), and
    # clamped so the grid has >= 2 steps when possible -> both v7x TCs get work.
    tile_b = int(min(tile_b, B))
    if B >= 16:
        half = max(8, (((B + 1) // 2) // 8) * 8)
        tile_b = min(tile_b, half)
    if tile_b < B:
        tile_b = max(8, (tile_b // 8) * 8)
    grid = (pl.cdiv(B, tile_b),)

    x_itm = x.dtype.itemsize
    w_itm = packed["w1"].dtype.itemsize
    w_bytes = (IN_DIM * HID + 2 * HID * HID + HID * OUT_PAD) * w_itm \
        + 4 * OUT_PAD * 4

    # VMEM budget derived from the tiling (v5e's scoped default is only 16 MiB):
    # double-buffered x tile + double-buffered out tile + resident weights
    # (counted 2x) + padded-logit live values + Mosaic internal-scratch slack.
    vmem_bytes = int(
        2 * tile_b * IN_DIM * x_itm
        + 2 * tile_b * OUT_DIM * 4
        + 2 * w_bytes
        + tile_b * OUT_PAD * 4
        + (4 << 20)
    )
    vmem_bytes = min(vmem_bytes, 128 << 20)

    cost = pl.CostEstimate(
        flops=2 * B * (IN_DIM * HID + 2 * HID * HID + HID * OUT_PAD),
        transcendentals=B * (OUT_PAD + 1),
        bytes_accessed=B * (IN_DIM * x_itm + OUT_DIM * 4) + w_bytes,
    )

    const = lambda i: (0, 0)
    out = pl.pallas_call(
        _mlp_kernel,
        out_shape=jax.ShapeDtypeStruct((B, OUT_DIM), jnp.float32),
        grid=grid,
        in_specs=[
            pl.BlockSpec((tile_b, IN_DIM), lambda i: (i, 0)),   # x: streamed
            pl.BlockSpec((IN_DIM, HID), const),                 # w1: resident
            pl.BlockSpec((HID, HID), const),                    # w2: resident
            pl.BlockSpec((HID, HID), const),                    # w3: resident
            pl.BlockSpec((HID, OUT_PAD), const),                # w4 (padded)
            pl.BlockSpec((4, OUT_PAD), const),                  # packed biases
        ],
        out_specs=pl.BlockSpec((tile_b, OUT_DIM), lambda i: (i, 0)),
        compiler_params=pltpu.CompilerParams(
            dimension_semantics=("parallel",),
            vmem_limit_bytes=vmem_bytes,
        ),
        cost_estimate=cost,
    )(x, packed["w1"], packed["w2"], packed["w3"], packed["w4p"],
      packed["bpack"])
    return out


def init_params(key):
    """Deterministic synthetic parameters with the shapes implied by Net.__init__."""
    dims = [(IN_DIM, HID), (HID, HID), (HID, HID), (HID, OUT_DIM)]
    params = {}
    keys = jax.random.split(key, 2 * len(dims))
    for i, (fan_in, fan_out) in enumerate(dims):
        scale = 1.0 / jnp.sqrt(jnp.float32(fan_in))
        w = jax.random.uniform(keys[2 * i], (fan_in, fan_out),
                               jnp.float32, -scale, scale)
        b = jax.random.uniform(keys[2 * i + 1], (1, fan_out),
                               jnp.float32, -scale, scale)
        params[f"w{i + 1}"] = w
        params[f"b{i + 1}"] = b
    return params


def _reference(x, p):
    h = jnp.maximum(x @ p["w1"] + p["b1"], 0.0)
    h = jnp.maximum(h @ p["w2"] + p["b2"], 0.0)
    h = jnp.maximum(h @ p["w3"] + p["b3"], 0.0)
    logits = h @ p["w4"] + p["b4"]
    return jax.nn.log_softmax(logits, axis=1)


if __name__ == "__main__":
    key = jax.random.PRNGKey(0)
    kx, kp = jax.random.split(key)
    params = init_params(kp)
    packed = pack_params(params)          # one-time prep, reused across calls

    # Small single-block case (B < 16 -> grid = 1).
    x_small = jax.random.normal(kx, (8, IN_DIM), dtype=jnp.float32)
    out_small = jax.block_until_ready(mlp_forward(x_small, packed))
    ref_small = _reference(x_small, params)
    assert out_small.shape == (8, OUT_DIM)
    assert jnp.allclose(out_small, ref_small, atol=1e-5, rtol=1e-5), \
        "mismatch vs reference (small)"

    # Batch grid + ragged last tile: 200 rows, 64-row tiles -> 4 steps.
    x_big = jax.random.normal(jax.random.fold_in(kx, 1), (200, IN_DIM),
                              dtype=jnp.float32)
    out_big = jax.block_until_ready(mlp_forward(x_big, packed, tile_b=64))
    ref_big = _reference(x_big, params)
    assert out_big.shape == (200, OUT_DIM)
    assert jnp.allclose(out_big, ref_big, atol=1e-5, rtol=1e-5), \
        "mismatch vs reference (tiled/ragged)"

    # Default tile path: tile_b auto-capped to ceil(B/2) -> grid >= 2 (v7x TCs).
    out_def = jax.block_until_ready(mlp_forward(x_big, packed))
    assert jnp.allclose(out_def, ref_big, atol=1e-5, rtol=1e-5), \
        "mismatch vs reference (default tiling)"

    print("KERNEL_OK")
</pallas_src>

<mosaic_0001>
module attributes {stable_mosaic.version = 11 : i64} {
  func.func @_mlp_kernel(%arg0: i32, %arg1: memref<8x784xf32, #tpu.memory_space<vmem>>, %arg2: memref<784x64xf32, #tpu.memory_space<vmem>>, %arg3: memref<64x64xf32, #tpu.memory_space<vmem>>, %arg4: memref<64x64xf32, #tpu.memory_space<vmem>>, %arg5: memref<64x128xf32, #tpu.memory_space<vmem>>, %arg6: memref<4x128xf32, #tpu.memory_space<vmem>>, %arg7: memref<8x10xf32, #tpu.memory_space<vmem>>) attributes {dimension_semantics = [#tpu.dimension_semantics<parallel>], iteration_bounds = array<i64: 1>, scalar_prefetch = 0 : i64, scratch_operands = 0 : i64, tpu.core_type = #tpu.core_type<tc>, window_params = [{transform_indices = @transform_0, window_bounds = array<i64: 8, 784>}, {pipeline_mode = #tpu.pipeline_mode<synchronous>, transform_indices = @transform_1, window_bounds = array<i64: 784, 64>}, {pipeline_mode = #tpu.pipeline_mode<synchronous>, transform_indices = @transform_2, window_bounds = array<i64: 64, 64>}, {pipeline_mode = #tpu.pipeline_mode<synchronous>, transform_indices = @transform_3, window_bounds = array<i64: 64, 64>}, {pipeline_mode = #tpu.pipeline_mode<synchronous>, transform_indices = @transform_4, window_bounds = array<i64: 64, 128>}, {pipeline_mode = #tpu.pipeline_mode<synchronous>, transform_indices = @transform_5, window_bounds = array<i64: 4, 128>}, {transform_indices = @transform_6, window_bounds = array<i64: 8, 10>}]} {
    %c0 = arith.constant 0 : index
    %c0_0 = arith.constant 0 : index
    %0 = vector.load %arg1[%c0, %c0_0] : memref<8x784xf32, #tpu.memory_space<vmem>>, vector<8x784xf32>
    %c0_1 = arith.constant 0 : index
    %c0_2 = arith.constant 0 : index
    %1 = vector.load %arg6[%c0_1, %c0_2] : memref<4x128xf32, #tpu.memory_space<vmem>>, vector<4x128xf32>
    %2 = vector.extract_strided_slice %1 {offsets = [0, 0], sizes = [1, 64], strides = [1, 1]} : vector<4x128xf32> to vector<1x64xf32>
    %3 = vector.extract_strided_slice %1 {offsets = [1, 0], sizes = [1, 64], strides = [1, 1]} : vector<4x128xf32> to vector<1x64xf32>
    %4 = vector.extract_strided_slice %1 {offsets = [2, 0], sizes = [1, 64], strides = [1, 1]} : vector<4x128xf32> to vector<1x64xf32>
    %5 = vector.extract_strided_slice %1 {offsets = [3, 0], sizes = [1, 128], strides = [1, 1]} : vector<4x128xf32> to vector<1x128xf32>
    %c0_3 = arith.constant 0 : index
    %c0_4 = arith.constant 0 : index
    %6 = vector.load %arg2[%c0_3, %c0_4] : memref<784x64xf32, #tpu.memory_space<vmem>>, vector<784x64xf32>
    %cst = arith.constant dense<0.000000e+00> : vector<8x64xf32>
    %7 = tpu.matmul %0, %6, %cst {dimension_numbers = #tpu.dot_dimension_numbers<[1], [0], [0], [1], [0, 0, 1, 1], [], []>} : vector<8x784xf32>, vector<784x64xf32>, vector<8x64xf32> -> vector<8x64xf32>
    %8 = vector.broadcast %2 : vector<1x64xf32> to vector<8x64xf32>
    %9 = arith.addf %7, %8 : vector<8x64xf32>
    %cst_5 = arith.constant 0.000000e+00 : f32
    %10 = vector.broadcast %cst_5 : f32 to vector<8x64xf32>
    %11 = arith.maximumf %9, %10 : vector<8x64xf32>
    %c0_6 = arith.constant 0 : index
    %c0_7 = arith.constant 0 : index
    %12 = vector.load %arg3[%c0_6, %c0_7] : memref<64x64xf32, #tpu.memory_space<vmem>>, vector<64x64xf32>
    %cst_8 = arith.constant dense<0.000000e+00> : vector<8x64xf32>
    %13 = tpu.matmul %11, %12, %cst_8 {dimension_numbers = #tpu.dot_dimension_numbers<[1], [0], [0], [1], [0, 0, 1, 1], [], []>} : vector<8x64xf32>, vector<64x64xf32>, vector<8x64xf32> -> vector<8x64xf32>
    %14 = vector.broadcast %3 : vector<1x64xf32> to vector<8x64xf32>
    %15 = arith.addf %13, %14 : vector<8x64xf32>
    %cst_9 = arith.constant 0.000000e+00 : f32
    %16 = vector.broadcast %cst_9 : f32 to vector<8x64xf32>
    %17 = arith.maximumf %15, %16 : vector<8x64xf32>
    %c0_10 = arith.constant 0 : index
    %c0_11 = arith.constant 0 : index
    %18 = vector.load %arg4[%c0_10, %c0_11] : memref<64x64xf32, #tpu.memory_space<vmem>>, vector<64x64xf32>
    %cst_12 = arith.constant dense<0.000000e+00> : vector<8x64xf32>
    %19 = tpu.matmul %17, %18, %cst_12 {dimension_numbers = #tpu.dot_dimension_numbers<[1], [0], [0], [1], [0, 0, 1, 1], [], []>} : vector<8x64xf32>, vector<64x64xf32>, vector<8x64xf32> -> vector<8x64xf32>
    %20 = vector.broadcast %4 : vector<1x64xf32> to vector<8x64xf32>
    %21 = arith.addf %19, %20 : vector<8x64xf32>
    %cst_13 = arith.constant 0.000000e+00 : f32
    %22 = vector.broadcast %cst_13 : f32 to vector<8x64xf32>
    %23 = arith.maximumf %21, %22 : vector<8x64xf32>
    %c0_14 = arith.constant 0 : index
    %c0_15 = arith.constant 0 : index
    %24 = vector.load %arg5[%c0_14, %c0_15] : memref<64x128xf32, #tpu.memory_space<vmem>>, vector<64x128xf32>
    %cst_16 = arith.constant dense<0.000000e+00> : vector<8x128xf32>
    %25 = tpu.matmul %23, %24, %cst_16 {dimension_numbers = #tpu.dot_dimension_numbers<[1], [0], [0], [1], [0, 0, 1, 1], [], []>} : vector<8x64xf32>, vector<64x128xf32>, vector<8x128xf32> -> vector<8x128xf32>
    %26 = vector.broadcast %5 : vector<1x128xf32> to vector<8x128xf32>
    %27 = arith.addf %25, %26 : vector<8x128xf32>
    %cst_17 = arith.constant dense<0xFF800000> : vector<8xf32>
    %28 = vector.multi_reduction <maximumf>, %27, %cst_17 [1] : vector<8x128xf32> to vector<8xf32>
    %29 = vector.shape_cast %28 : vector<8xf32> to vector<8x1xf32>
    %30 = vector.broadcast %29 : vector<8x1xf32> to vector<8x128xf32>
    %31 = arith.subf %27, %30 : vector<8x128xf32>
    %32 = math.exp %31 : vector<8x128xf32>
    %cst_18 = arith.constant dense<0.000000e+00> : vector<8xf32>
    %33 = vector.multi_reduction <add>, %32, %cst_18 [1] : vector<8x128xf32> to vector<8xf32>
    %34 = vector.shape_cast %33 : vector<8xf32> to vector<8x1xf32>
    %35 = math.log %34 : vector<8x1xf32>
    %36 = vector.extract_strided_slice %31 {offsets = [0, 0], sizes = [8, 10], strides = [1, 1]} : vector<8x128xf32> to vector<8x10xf32>
    %37 = vector.broadcast %35 : vector<8x1xf32> to vector<8x10xf32>
    %38 = arith.subf %36, %37 : vector<8x10xf32>
    %c0_19 = arith.constant 0 : index
    %c0_20 = arith.constant 0 : index
    %39 = vector.load %arg7[%c0_19, %c0_20] : memref<8x10xf32, #tpu.memory_space<vmem>>, vector<8x10xf32>
    tpu.vector_store %arg7[%c0_19, %c0_20], %38 {strides = array<i32>} : memref<8x10xf32, #tpu.memory_space<vmem>>, vector<8x10xf32>,
    return
  }
  func.func @transform_0(%arg0: i32) -> (i32, i32) {
    %c0_i32 = arith.constant 0 : i32
    %c0_i32_0 = arith.constant 0 : i32
    return %arg0, %c0_i32 : i32, i32
  }
  func.func @transform_1(%arg0: i32) -> (i32, i32) {
    %c0_i32 = arith.constant 0 : i32
    %c0_i32_0 = arith.constant 0 : i32
    %c0_i32_1 = arith.constant 0 : i32
    return %c0_i32, %c0_i32_0 : i32, i32
  }
  func.func @transform_2(%arg0: i32) -> (i32, i32) {
    %c0_i32 = arith.constant 0 : i32
    %c0_i32_0 = arith.constant 0 : i32
    %c0_i32_1 = arith.constant 0 : i32
    return %c0_i32, %c0_i32_0 : i32, i32
  }
  func.func @transform_3(%arg0: i32) -> (i32, i32) {
    %c0_i32 = arith.constant 0 : i32
    %c0_i32_0 = arith.constant 0 : i32
    %c0_i32_1 = arith.constant 0 : i32
    return %c0_i32, %c0_i32_0 : i32, i32
  }
  func.func @transform_4(%arg0: i32) -> (i32, i32) {
    %c0_i32 = arith.constant 0 : i32
    %c0_i32_0 = arith.constant 0 : i32
    %c0_i32_1 = arith.constant 0 : i32
    return %c0_i32, %c0_i32_0 : i32, i32
  }
  func.func @transform_5(%arg0: i32) -> (i32, i32) {
    %c0_i32 = arith.constant 0 : i32
    %c0_i32_0 = arith.constant 0 : i32
    %c0_i32_1 = arith.constant 0 : i32
    return %c0_i32, %c0_i32_0 : i32, i32
  }
  func.func @transform_6(%arg0: i32) -> (i32, i32) {
    %c0_i32 = arith.constant 0 : i32
    %c0_i32_0 = arith.constant 0 : i32
    return %arg0, %c0_i32 : i32, i32
  }
}

</mosaic_0001>

<llo_original>
// kernel: tpu_custom_call.1
$region0: #{tpu_custom_call.1}
  #allocation0 [shape = 'u32[]', space=smem, size = 0x4, offset = 0x4, fixed_abs, tag = 'smem constant byte address 0x4 - core index']
  #allocation1 [shape = 'u32[144,128]{1,0:T(1,128)}', space=vmem, size = 0x12000, scoped, tag = 'internal scratch']
  %s0 = inlined_call_operand.vmem [shape: f32[8,784], index: 0, kind: input, shape index: {}]
  %s1 = inlined_call_operand.vmem [shape: f32[784,64], index: 1, kind: input, shape index: {}]
  %s2 = inlined_call_operand.vmem [shape: f32[64,64], index: 2, kind: input, shape index: {}]
  %s3 = inlined_call_operand.vmem [shape: f32[64,64], index: 3, kind: input, shape index: {}]
  %s4 = inlined_call_operand.vmem [shape: f32[64,128], index: 4, kind: input, shape index: {}]
  %s5 = inlined_call_operand.vmem [shape: f32[4,128], index: 5, kind: input, shape index: {}]
  %s6 = inlined_call_operand.hbm [shape: f32[8,10], index: 6, kind: output, shape index: {}]
  %s7 = sld [smem:[#allocation0]]
  $region34: #{tpu_custom_call.1} parent=0
    _
  %s9 = ssub.s32 1, %s7
  %s10 = scalar_select 0, %s9, %s7
  $region1: #{tpu_custom_call.1} parent=0
    #allocation2 [shape = 'u8[4096]{0}', space=vmem, size = 0x1000, scoped, tag = 'output window, operand 0, single buffered']
    #allocation3 [shape = 's32[1]{0}', space=sflag, size = 0x4, scoped, tag = 'scoped memory for tpu_custom_call.1']
    %11 = vsyncpa [#allocation3], 0
    // Predicated region
    $region2: #{tpu_custom_call.1} parent=1 // pred_check
      _
    $region3: #{tpu_custom_call.1} parent=1 // pred_check_branch
      %13 = sbr.rel (0) target = $region5
    $region4: #{tpu_custom_call.1} parent=1 // pred_region
      _
    $region5: #{tpu_custom_call.1} parent=1 // pred_fallthru
      _
    // Predicated region
    $region6: #{tpu_custom_call.1} parent=1 // pred_check
      _
    $region7: #{tpu_custom_call.1} parent=1 // pred_check_branch
      %15 = sbr.rel (0) target = $region9
    $region8: #{tpu_custom_call.1} parent=1 // pred_region
      _
    $region9: #{tpu_custom_call.1} parent=1 // pred_fallthru
      _
    // Predicated region
    $region10: #{tpu_custom_call.1} parent=1 // pred_check
      _
    $region11: #{tpu_custom_call.1} parent=1 // pred_check_branch
      %17 = sbr.rel (0) target = $region13
    $region12: #{tpu_custom_call.1} parent=1 // pred_region
      _
    $region13: #{tpu_custom_call.1} parent=1 // pred_fallthru
      _
    // Predicated region
    $region14: #{tpu_custom_call.1} parent=1 // pred_check
      _
    $region15: #{tpu_custom_call.1} parent=1 // pred_check_branch
      %19 = sbr.rel (0) target = $region17
    $region16: #{tpu_custom_call.1} parent=1 // pred_region
      _
    $region17: #{tpu_custom_call.1} parent=1 // pred_fallthru
      _
    // Predicated region
    $region18: #{tpu_custom_call.1} parent=1 // pred_check
      _
    $region19: #{tpu_custom_call.1} parent=1 // pred_check_branch
      %21 = sbr.rel (0) target = $region21
    $region20: #{tpu_custom_call.1} parent=1 // pred_region
      _
    $region21: #{tpu_custom_call.1} parent=1 // pred_fallthru
      _
    // Predicated region
    $region22: #{tpu_custom_call.1} parent=1 // pred_check
      _
    $region23: #{tpu_custom_call.1} parent=1 // pred_check_branch
      %23 = sbr.rel (0) target = $region25
    $region24: #{tpu_custom_call.1} parent=1 // pred_region
      _
    $region25: #{tpu_custom_call.1} parent=1 // pred_fallthru
      _
    %v24 = vld [vmem:[%s0] sm:$0xff]
    %v25 = vld [vmem:[%s0 + $0x8] sm:$0xff]
    %v26 = vld [vmem:[%s0 + $0x10] sm:$0xff]
    %v27 = vld [vmem:[%s0 + $0x18] sm:$0xff]
    %v28 = vld [vmem:[%s0 + $0x20] sm:$0xff]
    %v29 = vld [vmem:[%s0 + $0x28] sm:$0xff]
    %v30 = vld [vmem:[%s0 + $0x30] sm:$0xff]
    %v31 = vld [vmem:[%s5] sm:$0xf]
    %v32 = vld [vmem:[%s1] sm:$0xff]
    %v33 = vld [vmem:[%s1 + $0x8] sm:$0xff]
    %v34 = vld [vmem:[%s1 + $0x10] sm:$0xff]
    %v35 = vld [vmem:[%s1 + $0x18] sm:$0xff]
    %v36 = vld [vmem:[%s1 + $0x20] sm:$0xff]
    %v37 = vld [vmem:[%s1 + $0x28] sm:$0xff]
    %v38 = vld [vmem:[%s1 + $0x30] sm:$0xff]
    %v39 = vld [vmem:[%s1 + $0x38] sm:$0xff]
    %v40 = vld [vmem:[%s1 + $0x40] sm:$0xff]
    %v41 = vld [vmem:[%s1 + $0x48] sm:$0xff]
    %v42 = vld [vmem:[%s1 + $0x50] sm:$0xff]
    %v43 = vld [vmem:[%s1 + $0x58] sm:$0xff]
    %v44 = vld [vmem:[%s1 + $0x60] sm:$0xff]
    %v45 = vld [vmem:[%s1 + $0x68] sm:$0xff]
    %v46 = vld [vmem:[%s1 + $0x70] sm:$0xff]
    %v47 = vld [vmem:[%s1 + $0x78] sm:$0xff]
    %v48 = vld [vmem:[%s1 + $0x80] sm:$0xff]
    %v49 = vld [vmem:[%s1 + $0x88] sm:$0xff]
    %v50 = vld [vmem:[%s1 + $0x90] sm:$0xff]
    %v51 = vld [vmem:[%s1 + $0x98] sm:$0xff]
    %v52 = vld [vmem:[%s1 + $0xa0] sm:$0xff]
    %v53 = vld [vmem:[%s1 + $0xa8] sm:$0xff]
    %v54 = vld [vmem:[%s1 + $0xb0] sm:$0xff]
    %v55 = vld [vmem:[%s1 + $0xb8] sm:$0xff]
    %v56 = vld [vmem:[%s1 + $0xc0] sm:$0xff]
    %v57 = vld [vmem:[%s1 + $0xc8] sm:$0xff]
    %v58 = vld [vmem:[%s1 + $0xd0] sm:$0xff]
    %v59 = vld [vmem:[%s1 + $0xd8] sm:$0xff]
    %v60 = vld [vmem:[%s1 + $0xe0] sm:$0xff]
    %v61 = vld [vmem:[%s1 + $0xe8] sm:$0xff]
    %v62 = vld [vmem:[%s1 + $0xf0] sm:$0xff]
    %v63 = vld [vmem:[%s1 + $0xf8] sm:$0xff]
    %v64 = vld [vmem:[%s1 + $0x100] sm:$0xff]
    %v65 = vld [vmem:[%s1 + $0x108] sm:$0xff]
    %v66 = vld [vmem:[%s1 + $0x110] sm:$0xff]
    %v67 = vld [vmem:[%s1 + $0x118] sm:$0xff]
    %v68 = vld [vmem:[%s1 + $0x120] sm:$0xff]
    %v69 = vld [vmem:[%s1 + $0x128] sm:$0xff]
    %v70 = vld [vmem:[%s1 + $0x130] sm:$0xff]
    %v71 = vld [vmem:[%s1 + $0x138] sm:$0xff]
    %v72 = vld [vmem:[%s1 + $0x140] sm:$0xff]
    %v73 = vld [vmem:[%s1 + $0x148] sm:$0xff]
    %v74 = vld [vmem:[%s1 + $0x150] sm:$0xff]
    %v75 = vld [vmem:[%s1 + $0x158] sm:$0xff]
    %v76 = vld [vmem:[%s1 + $0x160] sm:$0xff]
    %v77 = vld [vmem:[%s1 + $0x168] sm:$0xff]
    %v78 = vld [vmem:[%s1 + $0x170] sm:$0xff]
    %v79 = vld [vmem:[%s1 + $0x178] sm:$0xff]
    %v80 = vld [vmem:[%s1 + $0x180] sm:$0xff]
    %v81 = vld [vmem:[%s1 + $0x188] sm:$0xff]
    %v82 = vld [vmem:[%s1 + $0x190] sm:$0xff]
    %v83 = vld [vmem:[%s1 + $0x198] sm:$0xff]
    %v84 = vld [vmem:[%s1 + $0x1a0] sm:$0xff]
    %v85 = vld [vmem:[%s1 + $0x1a8] sm:$0xff]
    %v86 = vld [vmem:[%s1 + $0x1b0] sm:$0xff]
    %v87 = vld [vmem:[%s1 + $0x1b8] sm:$0xff]
    %v88 = vld [vmem:[%s1 + $0x1c0] sm:$0xff]
    %v89 = vld [vmem:[%s1 + $0x1c8] sm:$0xff]
    %v90 = vld [vmem:[%s1 + $0x1d0] sm:$0xff]
    %v91 = vld [vmem:[%s1 + $0x1d8] sm:$0xff]
    %v92 = vld [vmem:[%s1 + $0x1e0] sm:$0xff]
    %v93 = vld [vmem:[%s1 + $0x1e8] sm:$0xff]
    %v94 = vld [vmem:[%s1 + $0x1f0] sm:$0xff]
    %v95 = vld [vmem:[%s1 + $0x1f8] sm:$0xff]
    %v96 = vld [vmem:[%s1 + $0x200] sm:$0xff]
    %v97 = vld [vmem:[%s1 + $0x208] sm:$0xff]
    %v98 = vld [vmem:[%s1 + $0x210] sm:$0xff]
    %v99 = vld [vmem:[%s1 + $0x218] sm:$0xff]
    %v100 = vld [vmem:[%s1 + $0x220] sm:$0xff]
    %v101 = vld [vmem:[%s1 + $0x228] sm:$0xff]
    %v102 = vld [vmem:[%s1 + $0x230] sm:$0xff]
    %v103 = vld [vmem:[%s1 + $0x238] sm:$0xff]
    %v104 = vld [vmem:[%s1 + $0x240] sm:$0xff]
    %v105 = vld [vmem:[%s1 + $0x248] sm:$0xff]
    %v106 = vld [vmem:[%s1 + $0x250] sm:$0xff]
    %v107 = vld [vmem:[%s1 + $0x258] sm:$0xff]
    %v108 = vld [vmem:[%s1 + $0x260] sm:$0xff]
    %v109 = vld [vmem:[%s1 + $0x268] sm:$0xff]
    %v110 = vld [vmem:[%s1 + $0x270] sm:$0xff]
    %v111 = vld [vmem:[%s1 + $0x278] sm:$0xff]
    %v112 = vld [vmem:[%s1 + $0x280] sm:$0xff]
    %v113 = vld [vmem:[%s1 + $0x288] sm:$0xff]
    %v114 = vld [vmem:[%s1 + $0x290] sm:$0xff]
    %v115 = vld [vmem:[%s1 + $0x298] sm:$0xff]
    %v116 = vld [vmem:[%s1 + $0x2a0] sm:$0xff]
    %v117 = vld [vmem:[%s1 + $0x2a8] sm:$0xff]
    %v118 = vld [vmem:[%s1 + $0x2b0] sm:$0xff]
    %v119 = vld [vmem:[%s1 + $0x2b8] sm:$0xff]
    %v120 = vld [vmem:[%s1 + $0x2c0] sm:$0xff]
    %v121 = vld [vmem:[%s1 + $0x2c8] sm:$0xff]
    %v122 = vld [vmem:[%s1 + $0x2d0] sm:$0xff]
    %v123 = vld [vmem:[%s1 + $0x2d8] sm:$0xff]
    %v124 = vld [vmem:[%s1 + $0x2e0] sm:$0xff]
    %v125 = vld [vmem:[%s1 + $0x2e8] sm:$0xff]
    %v126 = vld [vmem:[%s1 + $0x2f0] sm:$0xff]
    %v127 = vld [vmem:[%s1 + $0x2f8] sm:$0xff]
    %v128 = vld [vmem:[%s1 + $0x300] sm:$0xff]
    %v129 = vld [vmem:[%s1 + $0x308] sm:$0xff]
    %v130 = vlaneseq
    %v131 = vshrl.u32 %v130, 7
    %v132 = vsub.s32 0, %v131
    %v133 = vrot.slane %v31, %v132
    %vm134 = vcmask 130048
    %v136 = vsel %vm134, %v30, 0
    %138 = vmatprep.subr.mxu0 0.0
    %139 = vmatpush1.msra.mxu0 %v32
    %140 = vmatprep.subr.mxu0 0.0
    %141 = vmatpush1.msra.mxu0 %v33
    %142 = vmatprep.subr.mxu0 0.0
    %143 = vmatpush1.msra.mxu0 %v34
    %144 = vmatprep.subr.mxu0 0.0
    %145 = vmatpush1.msra.mxu0 %v35
    %146 = vmatprep.subr.mxu0 0.0
    %147 = vmatpush1.msra.mxu0 %v36
    %148 = vmatprep.subr.mxu0 0.0
    %149 = vmatpush1.msra.mxu0 %v37
    %150 = vmatprep.subr.mxu0 0.0
    %151 = vmatpush1.msra.mxu0 %v38
    %152 = vmatprep.subr.mxu0 0.0
    %153 = vmatpush1.msra.mxu0 %v39
    %154 = vmatprep.subr.mxu0 0.0
    %155 = vmatpush1.msra.mxu0 %v40
    %156 = vmatprep.subr.mxu0 0.0
    %157 = vmatpush1.msra.mxu0 %v41
    %158 = vmatprep.subr.mxu0 0.0
    %159 = vmatpush1.msra.mxu0 %v42
    %160 = vmatprep.subr.mxu0 0.0
    %161 = vmatpush1.msra.mxu0 %v43
    %162 = vmatprep.subr.mxu0 0.0
    %163 = vmatpush1.msra.mxu0 %v44
    %164 = vmatprep.subr.mxu0 0.0
    %165 = vmatpush1.msra.mxu0 %v45
    %166 = vmatprep.subr.mxu0 0.0
    %167 = vmatpush1.msra.mxu0 %v46
    %168 = vmatprep.subr.mxu0 0.0
    %169 = vmatpush1.msra.mxu0 %v47
    %170 = vmatprep.subr.mxu0 0.0
    %171 = vmatpush1.msra.mxu0 %v48
    %172 = vmatprep.subr.mxu0 0.0
    %173 = vmatpush1.msra.mxu0 %v49
    %174 = vmatprep.subr.mxu0 0.0
    %175 = vmatpush1.msra.mxu0 %v50
    %176 = vmatprep.subr.mxu0 0.0
    %177 = vmatpush1.msra.mxu0 %v51
    %178 = vmatprep.subr.mxu0 0.0
    %179 = vmatpush1.msra.mxu0 %v52
    %180 = vmatprep.subr.mxu0 0.0
    %181 = vmatpush1.msra.mxu0 %v53
    %182 = vmatprep.subr.mxu0 0.0
    %183 = vmatpush1.msra.mxu0 %v54
    %184 = vmatprep.subr.mxu0 0.0
    %185 = vmatpush1.msra.mxu0 %v55
    %186 = vmatprep.subr.mxu0 0.0
    %187 = vmatpush1.msra.mxu0 %v56
    %188 = vmatprep.subr.mxu0 0.0
    %189 = vmatpush1.msra.mxu0 %v57
    %190 = vmatprep.subr.mxu0 0.0
    %191 = vmatpush1.msra.mxu0 %v58
    %192 = vmatprep.subr.mxu0 0.0
    %193 = vmatpush1.msra.mxu0 %v59
    %194 = vmatprep.subr.mxu0 0.0
    %195 = vmatpush1.msra.mxu0 %v60
    %196 = vmatprep.subr.mxu0 0.0
    %197 = vmatpush1.msra.mxu0 %v61
    %198 = vmatprep.subr.mxu0 0.0
    %199 = vmatpush1.msra.mxu0 %v62
    %200 = vmatprep.subr.mxu0 0.0
    %201 = vmatpush1.msra.mxu0 %v63
    %202 = vmatprep.mubr.f32.mxu0 %v25
    %203 = vmatmul.mubr.f32.gmra.mrb[0].mxu0 %v24
    %v204 = vpop.f32.mrb[0].mxu0
    %v205 = vadd.f32 %v133, %v204
    %v206 = vpop.f32.mrb[0].mxu0
    %207 = vdwg.mxu0
    %208 = vmatprep.subr.mxu0 0.0
    %209 = vmatpush1.msra.mxu0 %v64
    %210 = vmatprep.subr.mxu0 0.0
    %211 = vmatpush1.msra.mxu0 %v65
    %212 = vmatprep.subr.mxu0 0.0
    %213 = vmatpush1.msra.mxu0 %v66
    %214 = vmatprep.subr.mxu0 0.0
    %215 = vmatpush1.msra.mxu0 %v67
    %216 = vmatprep.subr.mxu0 0.0
    %217 = vmatpush1.msra.mxu0 %v68
    %218 = vmatprep.subr.mxu0 0.0
    %219 = vmatpush1.msra.mxu0 %v69
    %220 = vmatprep.subr.mxu0 0.0
    %221 = vmatpush1.msra.mxu0 %v70
    %222 = vmatprep.subr.mxu0 0.0
    %223 = vmatpush1.msra.mxu0 %v71
    %224 = vmatprep.subr.mxu0 0.0
    %225 = vmatpush1.msra.mxu0 %v72
    %226 = vmatprep.subr.mxu0 0.0
    %227 = vmatpush1.msra.mxu0 %v73
    %228 = vmatprep.subr.mxu0 0.0
    %229 = vmatpush1.msra.mxu0 %v74
    %230 = vmatprep.subr.mxu0 0.0
    %231 = vmatpush1.msra.mxu0 %v75
    %232 = vmatprep.subr.mxu0 0.0
    %233 = vmatpush1.msra.mxu0 %v76
    %234 = vmatprep.subr.mxu0 0.0
    %235 = vmatpush1.msra.mxu0 %v77
    %236 = vmatprep.subr.mxu0 0.0
    %237 = vmatpush1.msra.mxu0 %v78
    %238 = vmatprep.subr.mxu0 0.0
    %239 = vmatpush1.msra.mxu0 %v79
    %240 = vmatprep.subr.mxu0 0.0
    %241 = vmatpush1.msra.mxu0 %v80
    %242 = vmatprep.subr.mxu0 0.0
    %243 = vmatpush1.msra.mxu0 %v81
    %244 = vmatprep.subr.mxu0 0.0
    %245 = vmatpush1.msra.mxu0 %v82
    %246 = vmatprep.subr.mxu0 0.0
    %247 = vmatpush1.msra.mxu0 %v83
    %248 = vmatprep.subr.mxu0 0.0
    %249 = vmatpush1.msra.mxu0 %v84
    %250 = vmatprep.subr.mxu0 0.0
    %251 = vmatpush1.msra.mxu0 %v85
    %252 = vmatprep.subr.mxu0 0.0
    %253 = vmatpush1.msra.mxu0 %v86
    %254 = vmatprep.subr.mxu0 0.0
    %255 = vmatpush1.msra.mxu0 %v87
    %256 = vmatprep.subr.mxu0 0.0
    %257 = vmatpush1.msra.mxu0 %v88
    %258 = vmatprep.subr.mxu0 0.0
    %259 = vmatpush1.msra.mxu0 %v89
    %260 = vmatprep.subr.mxu0 0.0
    %261 = vmatpush1.msra.mxu0 %v90
    %262 = vmatprep.subr.mxu0 0.0
    %263 = vmatpush1.msra.mxu0 %v91
    %264 = vmatprep.subr.mxu0 0.0
    %265 = vmatpush1.msra.mxu0 %v92
    %266 = vmatprep.subr.mxu0 0.0
    %267 = vmatpush1.msra.mxu0 %v93
    %268 = vmatprep.subr.mxu0 0.0
    %269 = vmatpush1.msra.mxu0 %v94
    %270 = vmatprep.subr.mxu0 0.0
    %271 = vmatpush1.msra.mxu0 %v95
    %272 = vmatprep.mubr.f32.mxu0 %v27
    %273 = vmatmul.mubr.f32.gmra.mrb[0].mxu0 %v26
    %v274 = vpop.f32.mrb[0].mxu0
    %v275 = vadd.f32 %v205, %v274
    %v276 = vpop.f32.mrb[0].mxu0
    %277 = vdwg.mxu0
    %278 = vmatprep.subr.mxu0 0.0
    %279 = vmatpush1.msra.mxu0 %v96
    %280 = vmatprep.subr.mxu0 0.0
    %281 = vmatpush1.msra.mxu0 %v97
    %282 = vmatprep.subr.mxu0 0.0
    %283 = vmatpush1.msra.mxu0 %v98
    %284 = vmatprep.subr.mxu0 0.0
    %285 = vmatpush1.msra.mxu0 %v99
    %286 = vmatprep.subr.mxu0 0.0
    %287 = vmatpush1.msra.mxu0 %v100
    %288 = vmatprep.subr.mxu0 0.0
    %289 = vmatpush1.msra.mxu0 %v101
    %290 = vmatprep.subr.mxu0 0.0
    %291 = vmatpush1.msra.mxu0 %v102
    %292 = vmatprep.subr.mxu0 0.0
    %293 = vmatpush1.msra.mxu0 %v103
    %294 = vmatprep.subr.mxu0 0.0
    %295 = vmatpush1.msra.mxu0 %v104
    %296 = vmatprep.subr.mxu0 0.0
    %297 = vmatpush1.msra.mxu0 %v105
    %298 = vmatprep.subr.mxu0 0.0
    %299 = vmatpush1.msra.mxu0 %v106
    %300 = vmatprep.subr.mxu0 0.0
    %301 = vmatpush1.msra.mxu0 %v107
    %302 = vmatprep.subr.mxu0 0.0
    %303 = vmatpush1.msra.mxu0 %v108
    %304 = vmatprep.subr.mxu0 0.0
    %305 = vmatpush1.msra.mxu0 %v109
    %306 = vmatprep.subr.mxu0 0.0
    %307 = vmatpush1.msra.mxu0 %v110
    %308 = vmatprep.subr.mxu0 0.0
    %309 = vmatpush1.msra.mxu0 %v111
    %310 = vmatprep.subr.mxu0 0.0
    %311 = vmatpush1.msra.mxu0 %v112
    %312 = vmatprep.subr.mxu0 0.0
    %313 = vmatpush1.msra.mxu0 %v113
    %314 = vmatprep.subr.mxu0 0.0
    %315 = vmatpush1.msra.mxu0 %v114
    %316 = vmatprep.subr.mxu0 0.0
    %317 = vmatpush1.msra.mxu0 %v115
    %318 = vmatprep.subr.mxu0 0.0
    %319 = vmatpush1.msra.mxu0 %v116
    %320 = vmatprep.subr.mxu0 0.0
    %321 = vmatpush1.msra.mxu0 %v117
    %322 = vmatprep.subr.mxu0 0.0
    %323 = vmatpush1.msra.mxu0 %v118
    %324 = vmatprep.subr.mxu0 0.0
    %325 = vmatpush1.msra.mxu0 %v119
    %326 = vmatprep.subr.mxu0 0.0
    %327 = vmatpush1.msra.mxu0 %v120
    %328 = vmatprep.subr.mxu0 0.0
    %329 = vmatpush1.msra.mxu0 %v121
    %330 = vmatprep.subr.mxu0 0.0
    %331 = vmatpush1.msra.mxu0 %v122
    %332 = vmatprep.subr.mxu0 0.0
    %333 = vmatpush1.msra.mxu0 %v123
    %334 = vmatprep.subr.mxu0 0.0
    %335 = vmatpush1.msra.mxu0 %v124
    %336 = vmatprep.subr.mxu0 0.0
    %337 = vmatpush1.msra.mxu0 %v125
    %338 = vmatprep.subr.mxu0 0.0
    %339 = vmatpush1.msra.mxu0 %v126
    %340 = vmatprep.subr.mxu0 0.0
    %341 = vmatpush1.msra.mxu0 %v127
    %342 = vmatprep.mubr.f32.mxu0 %v29
    %343 = vmatmul.mubr.f32.gmra.mrb[0].mxu0 %v28
    %v344 = vpop.f32.mrb[0].mxu0
    %v345 = vadd.f32 %v275, %v344
    %v346 = vpop.f32.mrb[0].mxu0
    %347 = vdwg.mxu0
    %348 = vmatprep.subr.mxu0 0.0
    %349 = vmatpush1.msra.mxu0 %v128
    %350 = vmatprep.subr.mxu0 0.0
    %351 = vmatpush1.msra.mxu0 %v129
    %352 = vmatprep.subr.mxu0 0.0
    %353 = vmatpush1.msra.mxu0 0.0
    %354 = vmatprep.subr.mxu0 0.0
    %355 = vmatpush1.msra.mxu0 0.0
    %356 = vmatprep.subr.mxu0 0.0
    %357 = vmatpush1.msra.mxu0 0.0
    %358 = vmatprep.subr.mxu0 0.0
    %359 = vmatpush1.msra.mxu0 0.0
    %360 = vmatprep.subr.mxu0 0.0
    %361 = vmatpush1.msra.mxu0 0.0
    %362 = vmatprep.subr.mxu0 0.0
    %363 = vmatpush1.msra.mxu0 0.0
    %364 = vmatprep.subr.mxu0 0.0
    %365 = vmatpush1.msra.mxu0 0.0
    %366 = vmatprep.subr.mxu0 0.0
    %367 = vmatpush1.msra.mxu0 0.0
    %368 = vmatprep.subr.mxu0 0.0
    %369 = vmatpush1.msra.mxu0 0.0
    %370 = vmatprep.subr.mxu0 0.0
    %371 = vmatpush1.msra.mxu0 0.0
    %372 = vmatprep.subr.mxu0 0.0
    %373 = vmatpush1.msra.mxu0 0.0
    %374 = vmatprep.subr.mxu0 0.0
    %375 = vmatpush1.msra.mxu0 0.0
    %376 = vmatprep.subr.mxu0 0.0
    %377 = vmatpush1.msra.mxu0 0.0
    %378 = vmatprep.subr.mxu0 0.0
    %379 = vmatpush1.msra.mxu0 0.0
    %380 = vmatprep.subr.mxu0 0.0
    %381 = vmatpush1.msra.mxu0 0.0
    %382 = vmatprep.subr.mxu0 0.0
    %383 = vmatpush1.msra.mxu0 0.0
    %384 = vmatprep.subr.mxu0 0.0
    %385 = vmatpush1.msra.mxu0 0.0
    %386 = vmatprep.subr.mxu0 0.0
    %387 = vmatpush1.msra.mxu0 0.0
    %388 = vmatprep.subr.mxu0 0.0
    %389 = vmatpush1.msra.mxu0 0.0
    %390 = vmatprep.subr.mxu0 0.0
    %391 = vmatpush1.msra.mxu0 0.0
    %392 = vmatprep.subr.mxu0 0.0
    %393 = vmatpush1.msra.mxu0 0.0
    %394 = vmatprep.subr.mxu0 0.0
    %395 = vmatpush1.msra.mxu0 0.0
    %396 = vmatprep.subr.mxu0 0.0
    %397 = vmatpush1.msra.mxu0 0.0
    %398 = vmatprep.subr.mxu0 0.0
    %399 = vmatpush1.msra.mxu0 0.0
    %400 = vmatprep.subr.mxu0 0.0
    %401 = vmatpush1.msra.mxu0 0.0
    %402 = vmatprep.subr.mxu0 0.0
    %403 = vmatpush1.msra.mxu0 0.0
    %404 = vmatprep.subr.mxu0 0.0
    %405 = vmatpush1.msra.mxu0 0.0
    %406 = vmatprep.subr.mxu0 0.0
    %407 = vmatpush1.msra.mxu0 0.0
    %408 = vmatprep.subr.mxu0 0.0
    %409 = vmatpush1.msra.mxu0 0.0
    %410 = vmatprep.subr.mxu0 0.0
    %411 = vmatpush1.msra.mxu0 0.0
    %412 = vmatprep.mubr.f32.mxu0 0.0
    %413 = vmatmul.mubr.f32.gmra.mrb[0].mxu0 %v136
    %v414 = vpop.f32.mrb[0].mxu0
    %v415 = vadd.f32 %v345, %v414
    %v416 = vpop.f32.mrb[0].mxu0
    %417 = vdwg.mxu0
    %v418 = vmax.f32 %v415, 0.0
    %v419 = vld [vmem:[%s2] sm:$0xff]
    %v420 = vld [vmem:[%s2 + $0x8] sm:$0xff]
    %v421 = vld [vmem:[%s2 + $0x10] sm:$0xff]
    %v422 = vld [vmem:[%s2 + $0x18] sm:$0xff]
    %v423 = vld [vmem:[%s2 + $0x20] sm:$0xff]
    %v424 = vld [vmem:[%s2 + $0x28] sm:$0xff]
    %v425 = vld [vmem:[%s2 + $0x30] sm:$0xff]
    %v426 = vld [vmem:[%s2 + $0x38] sm:$0xff]
    %v427 = vlaneseq
    %v428 = vshrl.u32 %v427, 7
    %v429 = vsub.s32 1, %v428
    %v430 = vrot.slane %v31, %v429
    %vm431 = vcmask 523264
    %v433 = vsel %vm431, %v418, 0
    %435 = vmatprep.subr.mxu0 0.0
    %436 = vmatpush1.msra.mxu0 %v419
    %437 = vmatprep.subr.mxu0 0.0
    %438 = vmatpush1.msra.mxu0 %v420
    %439 = vmatprep.subr.mxu0 0.0
    %440 = vmatpush1.msra.mxu0 %v421
    %441 = vmatprep.subr.mxu0 0.0
    %442 = vmatpush1.msra.mxu0 %v422
    %443 = vmatprep.subr.mxu0 0.0
    %444 = vmatpush1.msra.mxu0 %v423
    %445 = vmatprep.subr.mxu0 0.0
    %446 = vmatpush1.msra.mxu0 %v424
    %447 = vmatprep.subr.mxu0 0.0
    %448 = vmatpush1.msra.mxu0 %v425
    %449 = vmatprep.subr.mxu0 0.0
    %450 = vmatpush1.msra.mxu0 %v426
    %451 = vmatprep.subr.mxu0 0.0
    %452 = vmatpush1.msra.mxu0 0.0
    %453 = vmatprep.subr.mxu0 0.0
    %454 = vmatpush1.msra.mxu0 0.0
    %455 = vmatprep.subr.mxu0 0.0
    %456 = vmatpush1.msra.mxu0 0.0
    %457 = vmatprep.subr.mxu0 0.0
    %458 = vmatpush1.msra.mxu0 0.0
    %459 = vmatprep.subr.mxu0 0.0
    %460 = vmatpush1.msra.mxu0 0.0
    %461 = vmatprep.subr.mxu0 0.0
    %462 = vmatpush1.msra.mxu0 0.0
    %463 = vmatprep.subr.mxu0 0.0
    %464 = vmatpush1.msra.mxu0 0.0
    %465 = vmatprep.subr.mxu0 0.0
    %466 = vmatpush1.msra.mxu0 0.0
    %467 = vmatprep.subr.mxu0 0.0
    %468 = vmatpush1.msra.mxu0 0.0
    %469 = vmatprep.subr.mxu0 0.0
    %470 = vmatpush1.msra.mxu0 0.0
    %471 = vmatprep.subr.mxu0 0.0
    %472 = vmatpush1.msra.mxu0 0.0
    %473 = vmatprep.subr.mxu0 0.0
    %474 = vmatpush1.msra.mxu0 0.0
    %475 = vmatprep.subr.mxu0 0.0
    %476 = vmatpush1.msra.mxu0 0.0
    %477 = vmatprep.subr.mxu0 0.0
    %478 = vmatpush1.msra.mxu0 0.0
    %479 = vmatprep.subr.mxu0 0.0
    %480 = vmatpush1.msra.mxu0 0.0
    %481 = vmatprep.subr.mxu0 0.0
    %482 = vmatpush1.msra.mxu0 0.0
    %483 = vmatprep.subr.mxu0 0.0
    %484 = vmatpush1.msra.mxu0 0.0
    %485 = vmatprep.subr.mxu0 0.0
    %486 = vmatpush1.msra.mxu0 0.0
    %487 = vmatprep.subr.mxu0 0.0
    %488 = vmatpush1.msra.mxu0 0.0
    %489 = vmatprep.subr.mxu0 0.0
    %490 = vmatpush1.msra.mxu0 0.0
    %491 = vmatprep.subr.mxu0 0.0
    %492 = vmatpush1.msra.mxu0 0.0
    %493 = vmatprep.subr.mxu0 0.0
    %494 = vmatpush1.msra.mxu0 0.0
    %495 = vmatprep.subr.mxu0 0.0
    %496 = vmatpush1.msra.mxu0 0.0
    %497 = vmatprep.subr.mxu0 0.0
    %498 = vmatpush1.msra.mxu0 0.0
    %499 = vmatprep.mubr.f32.mxu0 0.0
    %500 = vmatmul.mubr.f32.gmra.mrb[0].mxu0 %v433
    %v501 = vpop.f32.mrb[0].mxu0
    %v502 = vadd.f32 %v430, %v501
    %v503 = vpop.f32.mrb[0].mxu0
    %504 = vdwg.mxu0
    %v505 = vmax.f32 %v502, 0.0
    %v506 = vld [vmem:[%s3] sm:$0xff]
    %v507 = vld [vmem:[%s3 + $0x8] sm:$0xff]
    %v508 = vld [vmem:[%s3 + $0x10] sm:$0xff]
    %v509 = vld [vmem:[%s3 + $0x18] sm:$0xff]
    %v510 = vld [vmem:[%s3 + $0x20] sm:$0xff]
    %v511 = vld [vmem:[%s3 + $0x28] sm:$0xff]
    %v512 = vld [vmem:[%s3 + $0x30] sm:$0xff]
    %v513 = vld [vmem:[%s3 + $0x38] sm:$0xff]
    %v514 = vlaneseq
    %v515 = vshrl.u32 %v514, 7
    %v516 = vsub.s32 2, %v515
    %v517 = vrot.slane %v31, %v516
    %v519 = vsel %vm431, %v505, 0
    %521 = vmatprep.subr.mxu0 0.0
    %522 = vmatpush1.msra.mxu0 %v506
    %523 = vmatprep.subr.mxu0 0.0
    %524 = vmatpush1.msra.mxu0 %v507
    %525 = vmatprep.subr.mxu0 0.0
    %526 = vmatpush1.msra.mxu0 %v508
    %527 = vmatprep.subr.mxu0 0.0
    %528 = vmatpush1.msra.mxu0 %v509
    %529 = vmatprep.subr.mxu0 0.0
    %530 = vmatpush1.msra.mxu0 %v510
    %531 = vmatprep.subr.mxu0 0.0
    %532 = vmatpush1.msra.mxu0 %v511
    %533 = vmatprep.subr.mxu0 0.0
    %534 = vmatpush1.msra.mxu0 %v512
    %535 = vmatprep.subr.mxu0 0.0
    %536 = vmatpush1.msra.mxu0 %v513
    %537 = vmatprep.subr.mxu0 0.0
    %538 = vmatpush1.msra.mxu0 0.0
    %539 = vmatprep.subr.mxu0 0.0
    %540 = vmatpush1.msra.mxu0 0.0
    %541 = vmatprep.subr.mxu0 0.0
    %542 = vmatpush1.msra.mxu0 0.0
    %543 = vmatprep.subr.mxu0 0.0
    %544 = vmatpush1.msra.mxu0 0.0
    %545 = vmatprep.subr.mxu0 0.0
    %546 = vmatpush1.msra.mxu0 0.0
    %547 = vmatprep.subr.mxu0 0.0
    %548 = vmatpush1.msra.mxu0 0.0
    %549 = vmatprep.subr.mxu0 0.0
    %550 = vmatpush1.msra.mxu0 0.0
    %551 = vmatprep.subr.mxu0 0.0
    %552 = vmatpush1.msra.mxu0 0.0
    %553 = vmatprep.subr.mxu0 0.0
    %554 = vmatpush1.msra.mxu0 0.0
    %555 = vmatprep.subr.mxu0 0.0
    %556 = vmatpush1.msra.mxu0 0.0
    %557 = vmatprep.subr.mxu0 0.0
    %558 = vmatpush1.msra.mxu0 0.0
    %559 = vmatprep.subr.mxu0 0.0
    %560 = vmatpush1.msra.mxu0 0.0
    %561 = vmatprep.subr.mxu0 0.0
    %562 = vmatpush1.msra.mxu0 0.0
    %563 = vmatprep.subr.mxu0 0.0
    %564 = vmatpush1.msra.mxu0 0.0
    %565 = vmatprep.subr.mxu0 0.0
    %566 = vmatpush1.msra.mxu0 0.0
    %567 = vmatprep.subr.mxu0 0.0
    %568 = vmatpush1.msra.mxu0 0.0
    %569 = vmatprep.subr.mxu0 0.0
    %570 = vmatpush1.msra.mxu0 0.0
    %571 = vmatprep.subr.mxu0 0.0
    %572 = vmatpush1.msra.mxu0 0.0
    %573 = vmatprep.subr.mxu0 0.0
    %574 = vmatpush1.msra.mxu0 0.0
    %575 = vmatprep.subr.mxu0 0.0
    %576 = vmatpush1.msra.mxu0 0.0
    %577 = vmatprep.subr.mxu0 0.0
    %578 = vmatpush1.msra.mxu0 0.0
    %579 = vmatprep.subr.mxu0 0.0
    %580 = vmatpush1.msra.mxu0 0.0
    %581 = vmatprep.subr.mxu0 0.0
    %582 = vmatpush1.msra.mxu0 0.0
    %583 = vmatprep.subr.mxu0 0.0
    %584 = vmatpush1.msra.mxu0 0.0
    %585 = vmatprep.mubr.f32.mxu0 0.0
    %586 = vmatmul.mubr.f32.gmra.mrb[0].mxu0 %v519
    %v587 = vpop.f32.mrb[0].mxu0
    %v588 = vadd.f32 %v517, %v587
    %v589 = vpop.f32.mrb[0].mxu0
    %590 = vdwg.mxu0
    %v591 = vmax.f32 %v588, 0.0
    %v592 = vld [vmem:[%s4] sm:$0xff]
    %v593 = vld [vmem:[%s4 + $0x8] sm:$0xff]
    %v594 = vld [vmem:[%s4 + $0x10] sm:$0xff]
    %v595 = vld [vmem:[%s4 + $0x18] sm:$0xff]
    %v596 = vld [vmem:[%s4 + $0x20] sm:$0xff]
    %v597 = vld [vmem:[%s4 + $0x28] sm:$0xff]
    %v598 = vld [vmem:[%s4 + $0x30] sm:$0xff]
    %v599 = vld [vmem:[%s4 + $0x38] sm:$0xff]
    %v600 = vlaneseq
    %v601 = vshrl.u32 %v600, 7
    %v602 = vsub.s32 3, %v601
    %v603 = vrot.slane %v31, %v602
    %v605 = vsel %vm431, %v591, 0
    %607 = vmatprep.subr.mxu0 0.0
    %608 = vmatpush1.msra.mxu0 %v592
    %609 = vmatprep.subr.mxu0 0.0
    %610 = vmatpush1.msra.mxu0 %v593
    %611 = vmatprep.subr.mxu0 0.0
    %612 = vmatpush1.msra.mxu0 %v594
    %613 = vmatprep.subr.mxu0 0.0
    %614 = vmatpush1.msra.mxu0 %v595
    %615 = vmatprep.subr.mxu0 0.0
    %616 = vmatpush1.msra.mxu0 %v596
    %617 = vmatprep.subr.mxu0 0.0
    %618 = vmatpush1.msra.mxu0 %v597
    %619 = vmatprep.subr.mxu0 0.0
    %620 = vmatpush1.msra.mxu0 %v598
    %621 = vmatprep.subr.mxu0 0.0
    %622 = vmatpush1.msra.mxu0 %v599
    %623 = vmatprep.subr.mxu0 0.0
    %624 = vmatpush1.msra.mxu0 0.0
    %625 = vmatprep.subr.mxu0 0.0
    %626 = vmatpush1.msra.mxu0 0.0
    %627 = vmatprep.subr.mxu0 0.0
    %628 = vmatpush1.msra.mxu0 0.0
    %629 = vmatprep.subr.mxu0 0.0
    %630 = vmatpush1.msra.mxu0 0.0
    %631 = vmatprep.subr.mxu0 0.0
    %632 = vmatpush1.msra.mxu0 0.0
    %633 = vmatprep.subr.mxu0 0.0
    %634 = vmatpush1.msra.mxu0 0.0
    %635 = vmatprep.subr.mxu0 0.0
    %636 = vmatpush1.msra.mxu0 0.0
    %637 = vmatprep.subr.mxu0 0.0
    %638 = vmatpush1.msra.mxu0 0.0
    %639 = vmatprep.subr.mxu0 0.0
    %640 = vmatpush1.msra.mxu0 0.0
    %641 = vmatprep.subr.mxu0 0.0
    %642 = vmatpush1.msra.mxu0 0.0
    %643 = vmatprep.subr.mxu0 0.0
    %644 = vmatpush1.msra.mxu0 0.0
    %645 = vmatprep.subr.mxu0 0.0
    %646 = vmatpush1.msra.mxu0 0.0
    %647 = vmatprep.subr.mxu0 0.0
    %648 = vmatpush1.msra.mxu0 0.0
    %649 = vmatprep.subr.mxu0 0.0
    %650 = vmatpush1.msra.mxu0 0.0
    %651 = vmatprep.subr.mxu0 0.0
    %652 = vmatpush1.msra.mxu0 0.0
    %653 = vmatprep.subr.mxu0 0.0
    %654 = vmatpush1.msra.mxu0 0.0
    %655 = vmatprep.subr.mxu0 0.0
    %656 = vmatpush1.msra.mxu0 0.0
    %657 = vmatprep.subr.mxu0 0.0
    %658 = vmatpush1.msra.mxu0 0.0
    %659 = vmatprep.subr.mxu0 0.0
    %660 = vmatpush1.msra.mxu0 0.0
    %661 = vmatprep.subr.mxu0 0.0
    %662 = vmatpush1.msra.mxu0 0.0
    %663 = vmatprep.subr.mxu0 0.0
    %664 = vmatpush1.msra.mxu0 0.0
    %665 = vmatprep.subr.mxu0 0.0
    %666 = vmatpush1.msra.mxu0 0.0
    %667 = vmatprep.subr.mxu0 0.0
    %668 = vmatpush1.msra.mxu0 0.0
    %669 = vmatprep.subr.mxu0 0.0
    %670 = vmatpush1.msra.mxu0 0.0
    %671 = vmatprep.mubr.f32.mxu0 0.0
    %672 = vmatmul.mubr.f32.gmra.mrb[0].mxu0 %v605
    %v673 = vpop.f32.mrb[0].mxu0
    %v674 = vadd.f32 %v603, %v673
    %v675 = vpop.f32.mrb[0].mxu0
    %676 = vdwg.mxu0
    %677 = vmax.xlane.f32.xlu0 %v674
    %v678 = vpop.xlane.xlu0 %677
    %v679 = vsub.f32 %v674, %v678
    %v680 = vmul.f32 %v679, 1.442695
    %v681 = vpow.pop %v680
    %682 = vadd.xlane.f32.xlu0 %v681
    %v683 = vpop.xlane.xlu0 %682
    %v684 = vlog2.pop %v683
    %v685 = vmul.f32 %v684, 0.6931472
    %v686 = vsub.f32 %v679, %v685
    %vm687 = vcmask 80896
    %688 = vst.msk [vmem:[#allocation2] sm:$0xff] %vm687, %v686
    // Predicated region
    $region26: #{tpu_custom_call.1} parent=1 // pred_check
      _
    $region27: #{tpu_custom_call.1} parent=1 // pred_check_branch
      %690 = sbr.rel (0) target = $region29
    $region28: #{tpu_custom_call.1} parent=1 // pred_region
      %s692 = ssub.s32 128, 128
      %693 = vsyncadd [#allocation3], %s692
      %s695 = sshll.u32 [#allocation2], 4
      %s696 = int_to_ptr.vmem [resolvable:$true] %s695
      %698 = dma.vmem_to_hbm [thread:$0]  %s696, 128, %s6, [#allocation3]
    $region29: #{tpu_custom_call.1} parent=1 // pred_fallthru
      _
    // Predicated region
    $region30: #{tpu_custom_call.1} parent=1 // pred_check
      _
    $region31: #{tpu_custom_call.1} parent=1 // pred_check_branch
      %700 = sbr.rel (0) target = $region33
    $region32: #{tpu_custom_call.1} parent=1 // pred_region
      %701 = dma.done [#allocation3], 128
    $region33: #{tpu_custom_call.1} parent=1 // pred_fallthru
      _
    %702 = vsyncpa [#allocation3], 1

</llo_original>
